<compile_context>
chip_gen: v6e
topology: v6e:2x2x1
jax: 0.10.0
libtpu: 0.0.40
codegen_flags: <defaults>
</compile_context>

<pallas_src>
import jax
import jax.numpy as jnp
from jax.experimental import pallas as pl
from jax.experimental.pallas import tpu as pltpu

_LANES = 128
_SUBLANES = 8


def _round_up(x, m):
    return ((x + m - 1) // m) * m


def _tpu_config():
    """Returns (nsplit, max_tile_rows, vmem_limit_bytes) for the local TPU."""
    try:
        kind = jax.devices()[0].device_kind.lower()
    except Exception:
        kind = ""
    if "v7" in kind:
        # 2 TensorCores, 64 MiB VMEM: split across both TCs, 4 MiB blocks.
        # 2 inputs x 2 buffers x 4 MiB = 16 MiB + ~8-12 MiB temps < 48 MiB.
        return 2, 8192, 48 << 20
    if "v6" in kind:
        # 1 TC, 128 MiB VMEM: 4 MiB blocks (16 MiB buffers + temps << 64 MiB).
        return 1, 8192, 64 << 20
    if "v5e" in kind or "v5 lite" in kind or "v5lite" in kind:
        # Slower HBM + 16 MiB scoped default: 2 MiB blocks, raise limit to 32.
        return 1, 4096, 32 << 20
    # Unknown / older parts: conservative.
    return 1, 4096, 32 << 20


def _kernel(x_ref, y_ref, num_ref, den_ref):
    i = pl.program_id(1)

    @pl.when(i == 0)
    def _():
        num_ref[...] = jnp.zeros_like(num_ref)
        den_ref[...] = jnp.zeros_like(den_ref)

    x = x_ref[...].astype(jnp.float32)
    y = y_ref[...].astype(jnp.float32)
    d = y - x
    # Pure VPU adds into vreg-shaped (8,128) accumulators that live directly
    # in the (resident) output blocks; no XLU work, no mask, no scratch.
    num_ref[...] += jnp.sum((d * d).reshape(-1, _SUBLANES, _LANES), axis=0)
    den_ref[...] += jnp.sum((y * y).reshape(-1, _SUBLANES, _LANES), axis=0)


def spectral_convergence_loss(x_mag, y_mag):
    """Pallas equivalent of torch.norm(y-x, 'fro') / torch.norm(y, 'fro')."""
    assert x_mag.shape == y_mag.shape
    nsplit, max_tile_rows, vmem_limit = _tpu_config()

    # Flatten in native dtype (kernel casts to f32 in-register).
    x_flat = jnp.ravel(x_mag)
    y_flat = jnp.ravel(y_mag)
    n = x_flat.shape[0]

    # Balanced tiling: whole number of (tile_rows x 128) tiles per split,
    # tile_rows a multiple of 8 and <= max_tile_rows.  Pad overhead is at most
    # ~8 rows per tile per split of zeros (harmless for sums of squares).
    rows_needed = pl.cdiv(n, nsplit * _LANES)
    n_tiles = pl.cdiv(rows_needed, max_tile_rows)
    tile_rows = _round_up(pl.cdiv(rows_needed, n_tiles), _SUBLANES)
    rows_per_split = n_tiles * tile_rows
    rows_total = nsplit * rows_per_split
    n_pad = rows_total * _LANES

    if n_pad != n:
        x_flat = jnp.pad(x_flat, (0, n_pad - n))
        y_flat = jnp.pad(y_flat, (0, n_pad - n))

    x2d = x_flat.reshape(rows_total, _LANES)
    y2d = y_flat.reshape(rows_total, _LANES)

    in_spec = pl.BlockSpec((tile_rows, _LANES), lambda p, i: (p * n_tiles + i, 0))
    out_spec = pl.BlockSpec((_SUBLANES, _LANES), lambda p, i: (p, 0))

    if nsplit > 1 and hasattr(pltpu, "CORE_PARALLEL"):
        # v7x: shard the leading split axis across both TensorCores.
        dim_sem = (pltpu.CORE_PARALLEL, pltpu.ARBITRARY)
    else:
        dim_sem = ("parallel", "arbitrary")

    num_parts, den_parts = pl.pallas_call(
        _kernel,
        out_shape=(
            jax.ShapeDtypeStruct((nsplit * _SUBLANES, _LANES), jnp.float32),
            jax.ShapeDtypeStruct((nsplit * _SUBLANES, _LANES), jnp.float32),
        ),
        grid_spec=pltpu.PrefetchScalarGridSpec(
            num_scalar_prefetch=0,
            grid=(nsplit, n_tiles),
            in_specs=[in_spec, in_spec],
            out_specs=(out_spec, out_spec),
        ),
        compiler_params=pltpu.CompilerParams(
            dimension_semantics=dim_sem,
            vmem_limit_bytes=vmem_limit,
        ),
    )(x2d, y2d)

    num_total = jnp.sum(num_parts)
    den_total = jnp.sum(den_parts)
    # Matches the torch reference: NaN/Inf if ||y_mag||_F == 0 (no epsilon).
    return jnp.sqrt(num_total) / jnp.sqrt(den_total)


if __name__ == "__main__":
    key = jax.random.PRNGKey(0)
    kx, ky = jax.random.split(key)

    # Magnitude spectrograms: (batch=2, frames=16, freq_bins=65)
    shape = (2, 16, 65)
    x_mag = jnp.abs(jax.random.normal(kx, shape, dtype=jnp.float32))
    y_mag = jnp.abs(jax.random.normal(ky, shape, dtype=jnp.float32))

    loss = jax.block_until_ready(spectral_convergence_loss(x_mag, y_mag))
    ref = jnp.linalg.norm((y_mag - x_mag).reshape(-1)) / jnp.linalg.norm(
        y_mag.reshape(-1)
    )
    assert jnp.allclose(loss, ref, rtol=1e-5, atol=1e-6), (loss, ref)

    # Second check at a larger ragged shape to exercise the multi-tile
    # accumulation path (init @ i==0, accumulate, wrapper-side combine).
    shape2 = (4, 800, 700)
    x2 = jnp.abs(jax.random.normal(kx, shape2, dtype=jnp.float32))
    y2 = jnp.abs(jax.random.normal(ky, shape2, dtype=jnp.float32))
    loss2 = jax.block_until_ready(spectral_convergence_loss(x2, y2))
    ref2 = jnp.linalg.norm((y2 - x2).reshape(-1)) / jnp.linalg.norm(y2.reshape(-1))
    assert jnp.allclose(loss2, ref2, rtol=5e-4, atol=1e-6), (loss2, ref2)

    print("KERNEL_OK")
</pallas_src>

<mosaic_0001>
module attributes {stable_mosaic.version = 11 : i64} {
  func.func @_kernel(%arg0: i32, %arg1: i32, %arg2: memref<24x128xf32, #tpu.memory_space<vmem>>, %arg3: memref<24x128xf32, #tpu.memory_space<vmem>>, %arg4: memref<8x128xf32, #tpu.memory_space<vmem>>, %arg5: memref<8x128xf32, #tpu.memory_space<vmem>>) attributes {dimension_semantics = [#tpu.dimension_semantics<parallel>, #tpu.dimension_semantics<arbitrary>], iteration_bounds = array<i64: 1, 1>, scalar_prefetch = 0 : i64, scratch_operands = 0 : i64, tpu.core_type = #tpu.core_type<tc>, window_params = [{transform_indices = @transform_0, window_bounds = array<i64: 24, 128>}, {transform_indices = @transform_1, window_bounds = array<i64: 24, 128>}, {transform_indices = @transform_2, window_bounds = array<i64: 8, 128>}, {transform_indices = @transform_3, window_bounds = array<i64: 8, 128>}]} {
    %c0_i32 = arith.constant 0 : i32
    %0 = arith.cmpi eq, %arg1, %c0_i32 : i32
    %1 = arith.extui %0 : i1 to i32
    %c0_i32_0 = arith.constant 0 : i32
    %2 = arith.cmpi ne, %1, %c0_i32_0 : i32
    scf.if %2 {
      %cst_13 = arith.constant 0.000000e+00 : f32
      %18 = vector.broadcast %cst_13 : f32 to vector<8x128xf32>
      %c0_14 = arith.constant 0 : index
      %c0_15 = arith.constant 0 : index
      %19 = vector.load %arg4[%c0_14, %c0_15] : memref<8x128xf32, #tpu.memory_space<vmem>>, vector<8x128xf32>
      tpu.vector_store %arg4[%c0_14, %c0_15], %18 {strides = array<i32>} : memref<8x128xf32, #tpu.memory_space<vmem>>, vector<8x128xf32>,
      %cst_16 = arith.constant 0.000000e+00 : f32
      %20 = vector.broadcast %cst_16 : f32 to vector<8x128xf32>
      %c0_17 = arith.constant 0 : index
      %c0_18 = arith.constant 0 : index
      %21 = vector.load %arg5[%c0_17, %c0_18] : memref<8x128xf32, #tpu.memory_space<vmem>>, vector<8x128xf32>
      tpu.vector_store %arg5[%c0_17, %c0_18], %20 {strides = array<i32>} : memref<8x128xf32, #tpu.memory_space<vmem>>, vector<8x128xf32>,
    } else {
    }
    %c0 = arith.constant 0 : index
    %c0_1 = arith.constant 0 : index
    %3 = vector.load %arg2[%c0, %c0_1] : memref<24x128xf32, #tpu.memory_space<vmem>>, vector<24x128xf32>
    %c0_2 = arith.constant 0 : index
    %c0_3 = arith.constant 0 : index
    %4 = vector.load %arg3[%c0_2, %c0_3] : memref<24x128xf32, #tpu.memory_space<vmem>>, vector<24x128xf32>
    %5 = arith.subf %4, %3 : vector<24x128xf32>
    %c0_4 = arith.constant 0 : index
    %c0_5 = arith.constant 0 : index
    %6 = vector.load %arg4[%c0_4, %c0_5] : memref<8x128xf32, #tpu.memory_space<vmem>>, vector<8x128xf32>
    %7 = arith.mulf %5, %5 : vector<24x128xf32>
    %8 = vector.shape_cast %7 : vector<24x128xf32> to vector<3x8x128xf32>
    %cst = arith.constant dense<0.000000e+00> : vector<8x128xf32>
    %9 = vector.multi_reduction <add>, %8, %cst [0] : vector<3x8x128xf32> to vector<8x128xf32>
    %10 = arith.addf %6, %9 : vector<8x128xf32>
    %c0_6 = arith.constant 0 : index
    %c0_7 = arith.constant 0 : index
    %11 = vector.load %arg4[%c0_6, %c0_7] : memref<8x128xf32, #tpu.memory_space<vmem>>, vector<8x128xf32>
    tpu.vector_store %arg4[%c0_6, %c0_7], %10 {strides = array<i32>} : memref<8x128xf32, #tpu.memory_space<vmem>>, vector<8x128xf32>,
    %c0_8 = arith.constant 0 : index
    %c0_9 = arith.constant 0 : index
    %12 = vector.load %arg5[%c0_8, %c0_9] : memref<8x128xf32, #tpu.memory_space<vmem>>, vector<8x128xf32>
    %13 = arith.mulf %4, %4 : vector<24x128xf32>
    %14 = vector.shape_cast %13 : vector<24x128xf32> to vector<3x8x128xf32>
    %cst_10 = arith.constant dense<0.000000e+00> : vector<8x128xf32>
    %15 = vector.multi_reduction <add>, %14, %cst_10 [0] : vector<3x8x128xf32> to vector<8x128xf32>
    %16 = arith.addf %12, %15 : vector<8x128xf32>
    %c0_11 = arith.constant 0 : index
    %c0_12 = arith.constant 0 : index
    %17 = vector.load %arg5[%c0_11, %c0_12] : memref<8x128xf32, #tpu.memory_space<vmem>>, vector<8x128xf32>
    tpu.vector_store %arg5[%c0_11, %c0_12], %16 {strides = array<i32>} : memref<8x128xf32, #tpu.memory_space<vmem>>, vector<8x128xf32>,
    return
  }
  func.func @transform_0(%arg0: i32, %arg1: i32) -> (i32, i32) {
    %c1_i32 = arith.constant 1 : i32
    %0 = arith.muli %arg0, %c1_i32 : i32
    %1 = arith.addi %0, %arg1 : i32
    %c0_i32 = arith.constant 0 : i32
    %c0_i32_0 = arith.constant 0 : i32
    return %1, %c0_i32 : i32, i32
  }
  func.func @transform_1(%arg0: i32, %arg1: i32) -> (i32, i32) {
    %c1_i32 = arith.constant 1 : i32
    %0 = arith.muli %arg0, %c1_i32 : i32
    %1 = arith.addi %0, %arg1 : i32
    %c0_i32 = arith.constant 0 : i32
    %c0_i32_0 = arith.constant 0 : i32
    return %1, %c0_i32 : i32, i32
  }
  func.func @transform_2(%arg0: i32, %arg1: i32) -> (i32, i32) {
    %c0_i32 = arith.constant 0 : i32
    %c0_i32_0 = arith.constant 0 : i32
    return %arg0, %c0_i32 : i32, i32
  }
  func.func @transform_3(%arg0: i32, %arg1: i32) -> (i32, i32) {
    %c0_i32 = arith.constant 0 : i32
    %c0_i32_0 = arith.constant 0 : i32
    return %arg0, %c0_i32 : i32, i32
  }
}

</mosaic_0001>

<llo_original>
// kernel: tpu_custom_call.1
$region0: #{tpu_custom_call.1}
  #allocation0 [shape = 'u32[]', space=smem, size = 0x4, offset = 0x4, fixed_abs, tag = 'smem constant byte address 0x4 - core index']
  #allocation1 [shape = 'u32[144,128]{1,0:T(1,128)}', space=vmem, size = 0x12000, scoped, tag = 'internal scratch']
  %s0 = inlined_call_operand.hbm [shape: f32[24,128], index: 0, kind: input, shape index: {}]
  %s1 = inlined_call_operand.hbm [shape: f32[24,128], index: 1, kind: input, shape index: {}]
  %s2 = inlined_call_operand.hbm [shape: f32[8,128], index: 2, kind: output, shape index: {0}]
  %s3 = inlined_call_operand.hbm [shape: f32[8,128], index: 3, kind: output, shape index: {1}]
  %4 = xla_tuple %s2, %s3
  %s5 = sld [smem:[#allocation0]]
  $region38: #{tpu_custom_call.1} parent=0
    _
  %s7 = ssub.s32 1, %s5
  %s8 = scalar_select 0, %s7, %s5
  $region1: #{tpu_custom_call.1} parent=0
    #allocation2 [shape = 'u8[12288]{0}', space=vmem, size = 0x3000, scoped, tag = 'input window, operand 0, single buffered']
    #allocation3 [shape = 's32[1]{0}', space=sflag, size = 0x4, scoped, tag = 'scoped memory for tpu_custom_call.1']
    #allocation4 [shape = 's32[1]{0}', space=sflag, size = 0x4, scoped, tag = 'scoped memory for tpu_custom_call.1']
    #allocation5 [shape = 'u8[12288]{0}', space=vmem, size = 0x3000, scoped, tag = 'input window, operand 1, single buffered']
    #allocation6 [shape = 's32[1]{0}', space=sflag, size = 0x4, scoped, tag = 'scoped memory for tpu_custom_call.1']
    #allocation7 [shape = 'u8[4096]{0}', space=vmem, size = 0x1000, scoped, tag = 'output window, operand 0, single buffered']
    #allocation8 [shape = 'u8[4096]{0}', space=vmem, size = 0x1000, scoped, tag = 'output window, operand 1, single buffered']
    #allocation9 [shape = 's32[1]{0}', space=sflag, size = 0x4, scoped, tag = 'scoped memory for tpu_custom_call.1']
    %9 = vsyncpa [#allocation3], 0
    %10 = vsyncpa [#allocation6], 0
    %11 = vsyncpa [#allocation4], 0
    %12 = vsyncpa [#allocation9], 0
    // Predicated region
    $region2: #{tpu_custom_call.1} parent=1 // pred_check
      _
    $region3: #{tpu_custom_call.1} parent=1 // pred_check_branch
      %14 = sbr.rel (0) target = $region5
    $region4: #{tpu_custom_call.1} parent=1 // pred_region
      %s15 = sadd.s32 0, 0
      %s16 = smul.u32 3, %s15
      %s18 = ssub.s32 384, 384
      %19 = vsyncadd [#allocation3], %s18
      %s20 = smul.addr %s16, 128
      %s21 = scalar_lea.hbm %s0, %s20
      %s22 = sshll.u32 [#allocation2], 4
      %s23 = int_to_ptr.vmem [resolvable:$true] %s22
      %28 = dma.hbm_to_vmem [thread:$0]  %s21, 384, %s23, [#allocation3], 128, 128, 8
    $region5: #{tpu_custom_call.1} parent=1 // pred_fallthru
      _
    // Predicated region
    $region6: #{tpu_custom_call.1} parent=1 // pred_check
      _
    $region7: #{tpu_custom_call.1} parent=1 // pred_check_branch
      %30 = sbr.rel (0) target = $region9
    $region8: #{tpu_custom_call.1} parent=1 // pred_region
      %s31 = sadd.s32 0, 0
      %s32 = smul.u32 3, %s31
      %s34 = ssub.s32 384, 384
      %35 = vsyncadd [#allocation6], %s34
      %s36 = smul.addr %s32, 128
      %s37 = scalar_lea.hbm %s1, %s36
      %s38 = sshll.u32 [#allocation5], 4
      %s39 = int_to_ptr.vmem [resolvable:$true] %s38
      %44 = dma.hbm_to_vmem [thread:$0]  %s37, 384, %s39, [#allocation6], 128, 128, 8
    $region9: #{tpu_custom_call.1} parent=1 // pred_fallthru
      _
    // Predicated region
    $region10: #{tpu_custom_call.1} parent=1 // pred_check
      _
    $region11: #{tpu_custom_call.1} parent=1 // pred_check_branch
      %46 = sbr.rel (0) target = $region13
    $region12: #{tpu_custom_call.1} parent=1 // pred_region
      %47 = dma.done [#allocation3], 384
    $region13: #{tpu_custom_call.1} parent=1 // pred_fallthru
      _
    // Predicated region
    $region14: #{tpu_custom_call.1} parent=1 // pred_check
      _
    $region15: #{tpu_custom_call.1} parent=1 // pred_check_branch
      %49 = sbr.rel (0) target = $region17
    $region16: #{tpu_custom_call.1} parent=1 // pred_region
      %50 = dma.done [#allocation6], 384
    $region17: #{tpu_custom_call.1} parent=1 // pred_fallthru
      _
    %s51 = sadd.s32 0, 0
    %s52 = smul.u32 3, %s51
    %s53 = sadd.s32 0, 0
    %s54 = smul.u32 3, %s53
    %p55 = scmp.eq.s32.totalorder 0, 0
    // Predicated region
    $region18: #{tpu_custom_call.1} parent=1 // pred_check
      %p56 = pneg %p55
    $region19: #{tpu_custom_call.1} parent=1 // pred_check_branch
      %58 = sbr.rel (%p56) target = $region21
    $region20: #{tpu_custom_call.1} parent=1 // pred_region
      %59 = vst [vmem:[#allocation7] sm:$0xff] 0.0
      %60 = vst [vmem:[#allocation8] sm:$0xff] 0.0
    $region21: #{tpu_custom_call.1} parent=1 // pred_fallthru
      _
    %v61 = vld [vmem:[#allocation2] sm:$0xff]
    %v62 = vld [vmem:[#allocation2 + $0x8] sm:$0xff]
    %v63 = vld [vmem:[#allocation2 + $0x10] sm:$0xff]
    %v64 = vld [vmem:[#allocation5] sm:$0xff]
    %v65 = vld [vmem:[#allocation5 + $0x8] sm:$0xff]
    %v66 = vld [vmem:[#allocation5 + $0x10] sm:$0xff]
    %v67 = vsub.f32 %v64, %v61
    %v68 = vsub.f32 %v65, %v62
    %v69 = vsub.f32 %v66, %v63
    %v70 = vld [vmem:[#allocation7] sm:$0xff]
    %v71 = vmul.f32 %v67, %v67
    %v72 = vmul.f32 %v68, %v68
    %v73 = vmul.f32 %v69, %v69
    %v74 = vadd.f32 %v71, %v72
    %v75 = vadd.f32 %v74, %v73
    %v76 = vadd.f32 %v70, %v75
    %77 = vst [vmem:[#allocation7] sm:$0xff] %v76
    %v78 = vld [vmem:[#allocation8] sm:$0xff]
    %v79 = vmul.f32 %v64, %v64
    %v80 = vmul.f32 %v65, %v65
    %v81 = vmul.f32 %v66, %v66
    %v82 = vadd.f32 %v79, %v80
    %v83 = vadd.f32 %v82, %v81
    %v84 = vadd.f32 %v78, %v83
    %85 = vst [vmem:[#allocation8] sm:$0xff] %v84
    // Predicated region
    $region22: #{tpu_custom_call.1} parent=1 // pred_check
      _
    $region23: #{tpu_custom_call.1} parent=1 // pred_check_branch
      %87 = sbr.rel (0) target = $region25
    $region24: #{tpu_custom_call.1} parent=1 // pred_region
      %s89 = ssub.s32 128, 128
      %90 = vsyncadd [#allocation4], %s89
      %s92 = sshll.u32 [#allocation7], 4
      %s93 = int_to_ptr.vmem [resolvable:$true] %s92
      %95 = dma.vmem_to_hbm [thread:$0]  %s93, 128, %s2, [#allocation4]
    $region25: #{tpu_custom_call.1} parent=1 // pred_fallthru
      _
    // Predicated region
    $region26: #{tpu_custom_call.1} parent=1 // pred_check
      _
    $region27: #{tpu_custom_call.1} parent=1 // pred_check_branch
      %97 = sbr.rel (0) target = $region29
    $region28: #{tpu_custom_call.1} parent=1 // pred_region
      %s99 = ssub.s32 128, 128
      %100 = vsyncadd [#allocation9], %s99
      %s102 = sshll.u32 [#allocation8], 4
      %s103 = int_to_ptr.vmem [resolvable:$true] %s102
      %105 = dma.vmem_to_hbm [thread:$0]  %s103, 128, %s3, [#allocation9]
    $region29: #{tpu_custom_call.1} parent=1 // pred_fallthru
      _
    // Predicated region
    $region30: #{tpu_custom_call.1} parent=1 // pred_check
      _
    $region31: #{tpu_custom_call.1} parent=1 // pred_check_branch
      %107 = sbr.rel (0) target = $region33
    $region32: #{tpu_custom_call.1} parent=1 // pred_region
      %108 = dma.done [#allocation4], 128
    $region33: #{tpu_custom_call.1} parent=1 // pred_fallthru
      _
    // Predicated region
    $region34: #{tpu_custom_call.1} parent=1 // pred_check
      _
    $region35: #{tpu_custom_call.1} parent=1 // pred_check_branch
      %110 = sbr.rel (0) target = $region37
    $region36: #{tpu_custom_call.1} parent=1 // pred_region
      %111 = dma.done [#allocation9], 128
    $region37: #{tpu_custom_call.1} parent=1 // pred_fallthru
      _
    %112 = vsyncpa [#allocation3], 1
    %113 = vsyncpa [#allocation6], 1
    %114 = vsyncpa [#allocation4], 1
    %115 = vsyncpa [#allocation9], 1

</llo_original>
